<compile_context>
chip_gen: v6e
topology: v6e:2x2x1
jax: 0.10.0
libtpu: 0.0.40
codegen_flags: <defaults>
</compile_context>

<pallas_src>
import jax
import jax.numpy as jnp
from jax import lax
from jax.experimental import pallas as pl
from jax.experimental.pallas import tpu as pltpu

_LANES = 128
_CHUNK_ROWS = 512  # rows per in-kernel f32 sub-chunk (bounds live f32 temps)


def _round_down(x, m):
    return (x // m) * m


def _chip_profile():
    """Return (per-input block budget bytes, number of TensorCores to split over)."""
    kind = ""
    try:
        kind = jax.devices()[0].device_kind.lower()
    except Exception:
        pass
    if "v5" in kind and ("lite" in kind or "5e" in kind):
        return 2 << 20, 1          # v5e: 1 TC, keep blocks modest (16 MiB default scoped VMEM)
    if "v6" in kind or "6e" in kind:
        return 4 << 20, 1          # v6e: 1 TC, 128 MiB VMEM -> bigger blocks amortize step overhead
    if "v7" in kind or "7x" in kind:
        return 6 << 20, 2          # v7x: 2 TCs, 64 MiB VMEM, 3.2 TB/s -> big blocks + split
    return 2 << 20, 1              # unknown: conservative


# --------------------------------------------------------------------------
# Fast path: D % 128 == 0 -> (N, rows, 128) layout, full vreg occupancy.
# --------------------------------------------------------------------------
def _sums_lane_aligned(m1, m2, *, budget, n_tc, tile_rows=None, num_splits=None):
    n, d = m1.shape
    rows = d // _LANES
    m1 = m1.reshape(n, rows, _LANES)   # contiguous reshape (no pad)
    m2 = m2.reshape(n, rows, _LANES)

    is1 = jnp.dtype(m1.dtype).itemsize
    is2 = jnp.dtype(m2.dtype).itemsize
    itemsize = max(is1, is2)
    pack = max(8, 32 // min(is1, is2))   # packed-sublane multiple: 8/16/32

    if tile_rows is None:
        tile_rows = max(pack, budget // (n * _LANES * itemsize))
    if tile_rows >= rows:
        tile_rows = rows
    else:
        gran = _CHUNK_ROWS if tile_rows >= _CHUNK_ROWS else pack
        tile_rows = max(pack, _round_down(tile_rows, gran))
        tile_rows = min(tile_rows, rows)

    if tile_rows > _CHUNK_ROWS and tile_rows % _CHUNK_ROWS == 0:
        chunk_rows, n_chunks = _CHUNK_ROWS, tile_rows // _CHUNK_ROWS
    else:
        chunk_rows, n_chunks = tile_rows, 1

    num_row_blocks = pl.cdiv(rows, tile_rows)
    if num_splits is None:
        num_splits = n_tc if num_row_blocks >= n_tc else 1
    num_splits = max(1, min(num_splits, num_row_blocks))
    k_per_split = pl.cdiv(num_row_blocks, num_splits)
    # Mask needed iff (splits * steps * tile_rows) cover exceeds real rows
    # (ragged last tile and/or phantom tiles from an uneven split).
    need_mask = num_splits * k_per_split * tile_rows != rows

    def kernel(m1_ref, m2_ref, inter_ref, denom_ref):
        k = pl.program_id(1)

        @pl.when(k == 0)
        def _():
            inter_ref[...] = jnp.zeros_like(inter_ref)
            denom_ref[...] = jnp.zeros_like(denom_ref)

        def accum(a, b):
            inter_ref[...] += jnp.sum(a * b, axis=1)   # (n, 128)
            denom_ref[...] += jnp.sum(a + b, axis=1)   # fused s1 + s2

        def accum_hot():
            if n_chunks == 1:
                accum(m1_ref[...].astype(jnp.float32),
                      m2_ref[...].astype(jnp.float32))
            else:
                def body(c, carry):
                    r0 = pl.multiple_of(c * chunk_rows, chunk_rows)
                    sl = pl.ds(r0, chunk_rows)
                    accum(m1_ref[:, sl, :].astype(jnp.float32),
                          m2_ref[:, sl, :].astype(jnp.float32))
                    return carry
                lax.fori_loop(0, n_chunks, body, 0)

        if not need_mask:
            accum_hot()
        else:
            p = pl.program_id(0)
            tile_idx = p * k_per_split + k          # unclamped logical tile index
            nvalid = rows - tile_idx * tile_rows    # <=0 for phantom, <tile_rows for ragged
            is_full = nvalid >= tile_rows

            @pl.when(is_full)
            def _():
                accum_hot()

            @pl.when(jnp.logical_not(is_full))
            def _():
                nv = jnp.maximum(nvalid, 0)

                def body(c, carry):
                    r0 = pl.multiple_of(c * chunk_rows, chunk_rows)
                    sl = pl.ds(r0, chunk_rows)
                    local = lax.broadcasted_iota(
                        jnp.int32, (chunk_rows, _LANES), 0) + c * chunk_rows
                    valid = (local < nv)[None]
                    a = jnp.where(valid, m1_ref[:, sl, :].astype(jnp.float32), 0.0)
                    b = jnp.where(valid, m2_ref[:, sl, :].astype(jnp.float32), 0.0)
                    accum(a, b)
                    return carry
                lax.fori_loop(0, n_chunks, body, 0)

    def in_index_map(p, k):
        t = p * k_per_split + k
        # Clamp phantom tiles to a real block; in-kernel mask zeroes them.
        return (0, jnp.minimum(t, num_row_blocks - 1), 0)

    acc_spec = pl.BlockSpec((None, n, _LANES), lambda p, k: (p, 0, 0))

    in_block_bytes = 2 * n * tile_rows * _LANES * (is1 + is2)   # 2 pipeline buffers
    f32_tmp_bytes = 4 * n * chunk_rows * _LANES * 4
    acc_bytes = 4 * num_splits * n * _LANES * 4
    vmem_limit = int(min(max(in_block_bytes + f32_tmp_bytes + acc_bytes + (8 << 20),
                             24 << 20), 56 << 20))

    out_inter, out_denom = pl.pallas_call(
        kernel,
        out_shape=(
            jax.ShapeDtypeStruct((num_splits, n, _LANES), jnp.float32),
            jax.ShapeDtypeStruct((num_splits, n, _LANES), jnp.float32),
        ),
        grid_spec=pltpu.PrefetchScalarGridSpec(
            num_scalar_prefetch=0,
            grid=(num_splits, k_per_split),
            in_specs=[
                pl.BlockSpec((n, tile_rows, _LANES), in_index_map),
                pl.BlockSpec((n, tile_rows, _LANES), in_index_map),
            ],
            out_specs=[acc_spec, acc_spec],
        ),
        compiler_params=pltpu.CompilerParams(
            dimension_semantics=("parallel", "arbitrary"),
            vmem_limit_bytes=vmem_limit,
        ),
        cost_estimate=pl.CostEstimate(
            flops=5 * n * rows * _LANES,
            transcendentals=0,
            bytes_accessed=m1.size * is1 + m2.size * is2
            + 2 * num_splits * n * _LANES * 4,
        ),
    )(m1, m2)

    inter = out_inter.sum(axis=(0, 2))
    denom = out_denom.sum(axis=(0, 2))
    return inter, denom


# --------------------------------------------------------------------------
# Fallback: D % 128 != 0 -> stream the (N, D) array directly, NO jnp.pad.
# The <128-element tail is handled with an in-kernel lane mask on the one
# ragged block (usually the whole thing is a single full block).
# --------------------------------------------------------------------------
def _sums_ragged(m1, m2, *, budget):
    n, d = m1.shape
    is1 = jnp.dtype(m1.dtype).itemsize
    is2 = jnp.dtype(m2.dtype).itemsize
    itemsize = max(is1, is2)
    n_pad = ((n + 7) // 8) * 8              # VMEM sublane padding of the batch axis

    # TODO(synk): chunk this path's in-kernel f32 temporaries like the fast path.
    tile_d = max(_LANES, _round_down((budget // 2) // (n_pad * itemsize), _LANES))
    if tile_d >= d:
        tile_d, nblocks, ragged = d, 1, False
    else:
        nblocks = pl.cdiv(d, tile_d)
        ragged = (d % tile_d) != 0

    def kernel(m1_ref, m2_ref, inter_ref, denom_ref):
        k = pl.program_id(0)

        @pl.when(k == 0)
        def _():
            inter_ref[...] = jnp.zeros_like(inter_ref)
            denom_ref[...] = jnp.zeros_like(denom_ref)

        def accum(a, b):
            inter_ref[...] += jnp.sum(a * b, axis=1, keepdims=True)   # (n, 1)
            denom_ref[...] += jnp.sum(a + b, axis=1, keepdims=True)

        if not ragged:
            accum(m1_ref[...].astype(jnp.float32), m2_ref[...].astype(jnp.float32))
        else:
            nvalid = d - k * tile_d
            is_full = nvalid >= tile_d

            @pl.when(is_full)
            def _():
                accum(m1_ref[...].astype(jnp.float32),
                      m2_ref[...].astype(jnp.float32))

            @pl.when(jnp.logical_not(is_full))
            def _():
                lanes = lax.broadcasted_iota(jnp.int32, (1, tile_d), 1)
                valid = lanes < nvalid
                a = jnp.where(valid, m1_ref[...].astype(jnp.float32), 0.0)
                b = jnp.where(valid, m2_ref[...].astype(jnp.float32), 0.0)
                accum(a, b)

    in_block_bytes = 2 * n_pad * tile_d * (is1 + is2)
    f32_tmp_bytes = 4 * n_pad * tile_d * 4
    vmem_limit = int(min(max(in_block_bytes + f32_tmp_bytes + (8 << 20),
                             24 << 20), 56 << 20))

    acc_spec = pl.BlockSpec((n, 1), lambda k: (0, 0))
    out_inter, out_denom = pl.pallas_call(
        kernel,
        out_shape=(
            jax.ShapeDtypeStruct((n, 1), jnp.float32),
            jax.ShapeDtypeStruct((n, 1), jnp.float32),
        ),
        grid_spec=pltpu.PrefetchScalarGridSpec(
            num_scalar_prefetch=0,
            grid=(nblocks,),
            in_specs=[
                pl.BlockSpec((n, tile_d), lambda k: (0, k)),
                pl.BlockSpec((n, tile_d), lambda k: (0, k)),
            ],
            out_specs=[acc_spec, acc_spec],
        ),
        compiler_params=pltpu.CompilerParams(
            dimension_semantics=("arbitrary",),
            vmem_limit_bytes=vmem_limit,
        ),
    )(m1, m2)

    return out_inter[:, 0], out_denom[:, 0]


# --------------------------------------------------------------------------
# Public wrapper: matches SoftDiceLoss.forward(logits, targets).
# --------------------------------------------------------------------------
def soft_dice_loss(logits, targets, *, tile_rows=None, num_splits=None):
    assert logits.shape == targets.shape
    n = logits.shape[0]
    m1 = logits.reshape(n, -1)   # native dtype -> no extra HBM upcast pass
    m2 = targets.reshape(n, -1)
    d = m1.shape[1]

    budget, n_tc = _chip_profile()

    if d % _LANES == 0:
        inter, denom = _sums_lane_aligned(
            m1, m2, budget=budget, n_tc=n_tc,
            tile_rows=tile_rows, num_splits=num_splits)
    else:
        inter, denom = _sums_ragged(m1, m2, budget=budget)

    # Tiny finalize on per-sample sums: dice score, mean, 1 - mean.
    smooth = jnp.float32(1.0)
    score = 2.0 * (inter + smooth) / (denom + smooth)
    return jnp.float32(1.0) - jnp.sum(score) / jnp.float32(n)


if __name__ == "__main__":
    key = jax.random.PRNGKey(0)
    k1, k2, k3, k4 = jax.random.split(key, 4)

    def ref_loss(lg, tg):
        # Pure-JAX reference mirroring the PyTorch forward exactly.
        smooth = 1.0
        num = lg.shape[0]
        a = lg.reshape(num, -1).astype(jnp.float32)
        b = tg.reshape(num, -1).astype(jnp.float32)
        inter = (a * b).sum(1)
        score = 2.0 * (inter + smooth) / (a.sum(1) + b.sum(1) + smooth)
        return 1.0 - score.sum() / num

    # 1) f32, lane-aligned path (N=2, C=4, H=W=16 -> D=1024)
    logits = jax.nn.sigmoid(jax.random.normal(k1, (2, 4, 16, 16), jnp.float32))
    targets = (jax.random.uniform(k2, (2, 4, 16, 16)) > 0.5).astype(jnp.float32)
    loss = soft_dice_loss(logits, targets)
    jax.block_until_ready(loss)
    ref = ref_loss(logits, targets)
    assert abs(float(loss) - float(ref)) < 1e-5, (float(loss), float(ref))

    # 2) native bf16 streaming (inputs stay bf16 in HBM; f32 accumulation)
    lg16 = logits.astype(jnp.bfloat16)
    tg16 = targets.astype(jnp.bfloat16)
    loss16 = soft_dice_loss(lg16, tg16)
    jax.block_until_ready(loss16)
    ref16 = ref_loss(lg16, tg16)
    assert abs(float(loss16) - float(ref16)) < 2e-3, (float(loss16), float(ref16))

    # 3) D % 128 != 0: no-pad fallback path (N=2, C=3, H=5, W=7 -> D=105)
    lg_r = jax.nn.sigmoid(jax.random.normal(k3, (2, 3, 5, 7), jnp.float32))
    tg_r = (jax.random.uniform(k4, (2, 3, 5, 7)) > 0.5).astype(jnp.float32)
    loss_r = soft_dice_loss(lg_r, tg_r)
    jax.block_until_ready(loss_r)
    ref_r = ref_loss(lg_r, tg_r)
    assert abs(float(loss_r) - float(ref_r)) < 1e-5, (float(loss_r), float(ref_r))

    # 4) exercise the gated ragged row-tile mask of the lane-aligned kernel
    #    (D=1280 -> rows=10, forced tile_rows=8 -> last tile ragged)
    lg_m = jax.nn.sigmoid(jax.random.normal(k3, (2, 5, 16, 16), jnp.float32))
    tg_m = (jax.random.uniform(k4, (2, 5, 16, 16)) > 0.5).astype(jnp.float32)
    loss_m = soft_dice_loss(lg_m, tg_m, tile_rows=8, num_splits=1)
    jax.block_until_ready(loss_m)
    ref_m = ref_loss(lg_m, tg_m)
    assert abs(float(loss_m) - float(ref_m)) < 1e-5, (float(loss_m), float(ref_m))

    print("KERNEL_OK")
</pallas_src>

<mosaic_0001>
module attributes {stable_mosaic.version = 11 : i64} {
  func.func @kernel(%arg0: i32, %arg1: i32, %arg2: memref<2x8x128xf32, #tpu.memory_space<vmem>>, %arg3: memref<2x8x128xf32, #tpu.memory_space<vmem>>, %arg4: memref<1x2x128xf32, #tpu.memory_space<vmem>>, %arg5: memref<1x2x128xf32, #tpu.memory_space<vmem>>) attributes {dimension_semantics = [#tpu.dimension_semantics<parallel>, #tpu.dimension_semantics<arbitrary>], iteration_bounds = array<i64: 1, 1>, scalar_prefetch = 0 : i64, scratch_operands = 0 : i64, tpu.core_type = #tpu.core_type<tc>, window_params = [{transform_indices = @transform_0, window_bounds = array<i64: 2, 8, 128>}, {transform_indices = @transform_1, window_bounds = array<i64: 2, 8, 128>}, {transform_indices = @transform_2, window_bounds = array<i64: 1, 2, 128>}, {transform_indices = @transform_3, window_bounds = array<i64: 1, 2, 128>}]} {
    %c0_i32 = arith.constant 0 : i32
    %0 = arith.cmpi eq, %arg1, %c0_i32 : i32
    %1 = arith.extui %0 : i1 to i32
    %c0_i32_0 = arith.constant 0 : i32
    %2 = arith.cmpi ne, %1, %c0_i32_0 : i32
    scf.if %2 {
      %cst_19 = arith.constant 0.000000e+00 : f32
      %21 = vector.broadcast %cst_19 : f32 to vector<2x128xf32>
      %c0_20 = arith.constant 0 : index
      %c0_21 = arith.constant 0 : index
      %c0_22 = arith.constant 0 : index
      %22 = vector.load %arg4[%c0_20, %c0_21, %c0_22] : memref<1x2x128xf32, #tpu.memory_space<vmem>>, vector<1x2x128xf32>
      %23 = vector.shape_cast %22 : vector<1x2x128xf32> to vector<2x128xf32>
      %24 = vector.shape_cast %21 : vector<2x128xf32> to vector<1x2x128xf32>
      tpu.vector_store %arg4[%c0_20, %c0_21, %c0_22], %24 {strides = array<i32>} : memref<1x2x128xf32, #tpu.memory_space<vmem>>, vector<1x2x128xf32>,
      %cst_23 = arith.constant 0.000000e+00 : f32
      %25 = vector.broadcast %cst_23 : f32 to vector<2x128xf32>
      %c0_24 = arith.constant 0 : index
      %c0_25 = arith.constant 0 : index
      %c0_26 = arith.constant 0 : index
      %26 = vector.load %arg5[%c0_24, %c0_25, %c0_26] : memref<1x2x128xf32, #tpu.memory_space<vmem>>, vector<1x2x128xf32>
      %27 = vector.shape_cast %26 : vector<1x2x128xf32> to vector<2x128xf32>
      %28 = vector.shape_cast %25 : vector<2x128xf32> to vector<1x2x128xf32>
      tpu.vector_store %arg5[%c0_24, %c0_25, %c0_26], %28 {strides = array<i32>} : memref<1x2x128xf32, #tpu.memory_space<vmem>>, vector<1x2x128xf32>,
    } else {
    }
    %c0 = arith.constant 0 : index
    %c0_1 = arith.constant 0 : index
    %c0_2 = arith.constant 0 : index
    %3 = vector.load %arg2[%c0, %c0_1, %c0_2] : memref<2x8x128xf32, #tpu.memory_space<vmem>>, vector<2x8x128xf32>
    %c0_3 = arith.constant 0 : index
    %c0_4 = arith.constant 0 : index
    %c0_5 = arith.constant 0 : index
    %4 = vector.load %arg3[%c0_3, %c0_4, %c0_5] : memref<2x8x128xf32, #tpu.memory_space<vmem>>, vector<2x8x128xf32>
    %c0_6 = arith.constant 0 : index
    %c0_7 = arith.constant 0 : index
    %c0_8 = arith.constant 0 : index
    %5 = vector.load %arg4[%c0_6, %c0_7, %c0_8] : memref<1x2x128xf32, #tpu.memory_space<vmem>>, vector<1x2x128xf32>
    %6 = vector.shape_cast %5 : vector<1x2x128xf32> to vector<2x128xf32>
    %7 = arith.mulf %3, %4 : vector<2x8x128xf32>
    %cst = arith.constant dense<0.000000e+00> : vector<2x128xf32>
    %8 = vector.multi_reduction <add>, %7, %cst [1] : vector<2x8x128xf32> to vector<2x128xf32>
    %9 = arith.addf %6, %8 : vector<2x128xf32>
    %c0_9 = arith.constant 0 : index
    %c0_10 = arith.constant 0 : index
    %c0_11 = arith.constant 0 : index
    %10 = vector.load %arg4[%c0_9, %c0_10, %c0_11] : memref<1x2x128xf32, #tpu.memory_space<vmem>>, vector<1x2x128xf32>
    %11 = vector.shape_cast %10 : vector<1x2x128xf32> to vector<2x128xf32>
    %12 = vector.shape_cast %9 : vector<2x128xf32> to vector<1x2x128xf32>
    tpu.vector_store %arg4[%c0_9, %c0_10, %c0_11], %12 {strides = array<i32>} : memref<1x2x128xf32, #tpu.memory_space<vmem>>, vector<1x2x128xf32>,
    %c0_12 = arith.constant 0 : index
    %c0_13 = arith.constant 0 : index
    %c0_14 = arith.constant 0 : index
    %13 = vector.load %arg5[%c0_12, %c0_13, %c0_14] : memref<1x2x128xf32, #tpu.memory_space<vmem>>, vector<1x2x128xf32>
    %14 = vector.shape_cast %13 : vector<1x2x128xf32> to vector<2x128xf32>
    %15 = arith.addf %3, %4 : vector<2x8x128xf32>
    %cst_15 = arith.constant dense<0.000000e+00> : vector<2x128xf32>
    %16 = vector.multi_reduction <add>, %15, %cst_15 [1] : vector<2x8x128xf32> to vector<2x128xf32>
    %17 = arith.addf %14, %16 : vector<2x128xf32>
    %c0_16 = arith.constant 0 : index
    %c0_17 = arith.constant 0 : index
    %c0_18 = arith.constant 0 : index
    %18 = vector.load %arg5[%c0_16, %c0_17, %c0_18] : memref<1x2x128xf32, #tpu.memory_space<vmem>>, vector<1x2x128xf32>
    %19 = vector.shape_cast %18 : vector<1x2x128xf32> to vector<2x128xf32>
    %20 = vector.shape_cast %17 : vector<2x128xf32> to vector<1x2x128xf32>
    tpu.vector_store %arg5[%c0_16, %c0_17, %c0_18], %20 {strides = array<i32>} : memref<1x2x128xf32, #tpu.memory_space<vmem>>, vector<1x2x128xf32>,
    return
  }
  func.func @transform_0(%arg0: i32, %arg1: i32) -> (i32, i32, i32) {
    %c1_i32 = arith.constant 1 : i32
    %0 = arith.muli %arg0, %c1_i32 : i32
    %1 = arith.addi %0, %arg1 : i32
    %c0_i32 = arith.constant 0 : i32
    %2 = arith.minsi %1, %c0_i32 : i32
    %c0_i32_0 = arith.constant 0 : i32
    %c0_i32_1 = arith.constant 0 : i32
    %c0_i32_2 = arith.constant 0 : i32
    return %c0_i32_0, %2, %c0_i32_1 : i32, i32, i32
  }
  func.func @transform_1(%arg0: i32, %arg1: i32) -> (i32, i32, i32) {
    %c1_i32 = arith.constant 1 : i32
    %0 = arith.muli %arg0, %c1_i32 : i32
    %1 = arith.addi %0, %arg1 : i32
    %c0_i32 = arith.constant 0 : i32
    %2 = arith.minsi %1, %c0_i32 : i32
    %c0_i32_0 = arith.constant 0 : i32
    %c0_i32_1 = arith.constant 0 : i32
    %c0_i32_2 = arith.constant 0 : i32
    return %c0_i32_0, %2, %c0_i32_1 : i32, i32, i32
  }
  func.func @transform_2(%arg0: i32, %arg1: i32) -> (i32, i32, i32) {
    %c0_i32 = arith.constant 0 : i32
    %c0_i32_0 = arith.constant 0 : i32
    %c0_i32_1 = arith.constant 0 : i32
    return %arg0, %c0_i32, %c0_i32_0 : i32, i32, i32
  }
  func.func @transform_3(%arg0: i32, %arg1: i32) -> (i32, i32, i32) {
    %c0_i32 = arith.constant 0 : i32
    %c0_i32_0 = arith.constant 0 : i32
    %c0_i32_1 = arith.constant 0 : i32
    return %arg0, %c0_i32, %c0_i32_0 : i32, i32, i32
  }
}

</mosaic_0001>

<llo_original>
// kernel: tpu_custom_call.1
$region0: #{tpu_custom_call.1}
  #allocation0 [shape = 'u32[]', space=smem, size = 0x4, offset = 0x4, fixed_abs, tag = 'smem constant byte address 0x4 - core index']
  #allocation1 [shape = 'u32[144,128]{1,0:T(1,128)}', space=vmem, size = 0x12000, scoped, tag = 'internal scratch']
  %s0 = inlined_call_operand.hbm [shape: f32[2,8,128], index: 0, kind: input, shape index: {}]
  %s1 = inlined_call_operand.hbm [shape: f32[2,8,128], index: 1, kind: input, shape index: {}]
  %s2 = inlined_call_operand.hbm [shape: f32[1,2,128], index: 2, kind: output, shape index: {0}]
  %s3 = inlined_call_operand.hbm [shape: f32[1,2,128], index: 3, kind: output, shape index: {1}]
  %4 = xla_tuple %s2, %s3
  %s5 = sld [smem:[#allocation0]]
  $region38: #{tpu_custom_call.1} parent=0
    _
  %s7 = ssub.s32 1, %s5
  %s8 = scalar_select 0, %s7, %s5
  $region1: #{tpu_custom_call.1} parent=0
    #allocation2 [shape = 'u8[8192]{0}', space=vmem, size = 0x2000, scoped, tag = 'input window, operand 0, single buffered']
    #allocation3 [shape = 's32[1]{0}', space=sflag, size = 0x4, scoped, tag = 'scoped memory for tpu_custom_call.1']
    #allocation4 [shape = 's32[1]{0}', space=sflag, size = 0x4, scoped, tag = 'scoped memory for tpu_custom_call.1']
    #allocation5 [shape = 'u8[8192]{0}', space=vmem, size = 0x2000, scoped, tag = 'input window, operand 1, single buffered']
    #allocation6 [shape = 's32[1]{0}', space=sflag, size = 0x4, scoped, tag = 'scoped memory for tpu_custom_call.1']
    #allocation7 [shape = 'u8[1024]{0}', space=vmem, size = 0x400, scoped, tag = 'output window, operand 0, single buffered']
    #allocation8 [shape = 'u8[1024]{0}', space=vmem, size = 0x400, scoped, tag = 'output window, operand 1, single buffered']
    #allocation9 [shape = 's32[1]{0}', space=sflag, size = 0x4, scoped, tag = 'scoped memory for tpu_custom_call.1']
    %9 = vsyncpa [#allocation3], 0
    %10 = vsyncpa [#allocation6], 0
    %11 = vsyncpa [#allocation4], 0
    %12 = vsyncpa [#allocation9], 0
    // Predicated region
    $region2: #{tpu_custom_call.1} parent=1 // pred_check
      _
    $region3: #{tpu_custom_call.1} parent=1 // pred_check_branch
      %14 = sbr.rel (0) target = $region5
    $region4: #{tpu_custom_call.1} parent=1 // pred_region
      %s15 = sadd.s32 0, 0
      %p16 = scmp.lt.s32.totalorder %s15, 0
      %s17 = scalar_select %p16, %s15, 0
      %s19 = ssub.s32 256, 256
      %20 = vsyncadd [#allocation3], %s19
      %s21 = smul.addr %s17, 128
      %s22 = scalar_lea.hbm %s0, %s21
      %s23 = sshll.u32 [#allocation2], 4
      %s24 = int_to_ptr.vmem [resolvable:$true] %s23
      %29 = dma.hbm_to_vmem [thread:$0]  %s22, 256, %s24, [#allocation3], 128, 128, 8
    $region5: #{tpu_custom_call.1} parent=1 // pred_fallthru
      _
    // Predicated region
    $region6: #{tpu_custom_call.1} parent=1 // pred_check
      _
    $region7: #{tpu_custom_call.1} parent=1 // pred_check_branch
      %31 = sbr.rel (0) target = $region9
    $region8: #{tpu_custom_call.1} parent=1 // pred_region
      %s32 = sadd.s32 0, 0
      %p33 = scmp.lt.s32.totalorder %s32, 0
      %s34 = scalar_select %p33, %s32, 0
      %s36 = ssub.s32 256, 256
      %37 = vsyncadd [#allocation6], %s36
      %s38 = smul.addr %s34, 128
      %s39 = scalar_lea.hbm %s1, %s38
      %s40 = sshll.u32 [#allocation5], 4
      %s41 = int_to_ptr.vmem [resolvable:$true] %s40
      %46 = dma.hbm_to_vmem [thread:$0]  %s39, 256, %s41, [#allocation6], 128, 128, 8
    $region9: #{tpu_custom_call.1} parent=1 // pred_fallthru
      _
    // Predicated region
    $region10: #{tpu_custom_call.1} parent=1 // pred_check
      _
    $region11: #{tpu_custom_call.1} parent=1 // pred_check_branch
      %48 = sbr.rel (0) target = $region13
    $region12: #{tpu_custom_call.1} parent=1 // pred_region
      %49 = dma.done [#allocation3], 256
    $region13: #{tpu_custom_call.1} parent=1 // pred_fallthru
      _
    // Predicated region
    $region14: #{tpu_custom_call.1} parent=1 // pred_check
      _
    $region15: #{tpu_custom_call.1} parent=1 // pred_check_branch
      %51 = sbr.rel (0) target = $region17
    $region16: #{tpu_custom_call.1} parent=1 // pred_region
      %52 = dma.done [#allocation6], 256
    $region17: #{tpu_custom_call.1} parent=1 // pred_fallthru
      _
    %s53 = sadd.s32 0, 0
    %p54 = scmp.lt.s32.totalorder %s53, 0
    %s55 = scalar_select %p54, %s53, 0
    %s56 = sadd.s32 0, 0
    %p57 = scmp.lt.s32.totalorder %s56, 0
    %s58 = scalar_select %p57, %s56, 0
    %p59 = scmp.eq.s32.totalorder 0, 0
    // Predicated region
    $region18: #{tpu_custom_call.1} parent=1 // pred_check
      %p60 = pneg %p59
    $region19: #{tpu_custom_call.1} parent=1 // pred_check_branch
      %62 = sbr.rel (%p60) target = $region21
    $region20: #{tpu_custom_call.1} parent=1 // pred_region
      %63 = vst [vmem:[#allocation7] sm:$0x3] 0.0
      %64 = vst [vmem:[#allocation8] sm:$0x3] 0.0
    $region21: #{tpu_custom_call.1} parent=1 // pred_fallthru
      _
    %v65 = vld [vmem:[#allocation2] sm:$0xff]
    %v66 = vld [vmem:[#allocation2 + $0x8] sm:$0xff]
    %v67 = vld [vmem:[#allocation5] sm:$0xff]
    %v68 = vld [vmem:[#allocation5 + $0x8] sm:$0xff]
    %v69 = vld [vmem:[#allocation7] sm:$0x3]
    %v70 = vmul.f32 %v65, %v67
    %v71 = vmul.f32 %v66, %v68
    %v72 = vrot.slane %v70, 4
    %v73 = vadd.f32 %v70, %v72
    %v74 = vrot.slane %v73, 2
    %v75 = vadd.f32 %v73, %v74
    %v76 = vrot.slane %v75, 1
    %v77 = vadd.f32 %v75, %v76
    %v78 = vrot.slane %v71, 4
    %v79 = vadd.f32 %v71, %v78
    %v80 = vrot.slane %v79, 2
    %v81 = vadd.f32 %v79, %v80
    %v82 = vrot.slane %v81, 1
    %v83 = vadd.f32 %v81, %v82
    %vm86 = vcmask 1041409
    %v87 = vsel %vm86, %v83, %v77
    %v89 = vadd.f32 %v69, %v87
    %90 = vst [vmem:[#allocation7] sm:$0x3] %v89
    %v91 = vld [vmem:[#allocation8] sm:$0x3]
    %v92 = vadd.f32 %v65, %v67
    %v93 = vadd.f32 %v66, %v68
    %v94 = vrot.slane %v92, 4
    %v95 = vadd.f32 %v92, %v94
    %v96 = vrot.slane %v95, 2
    %v97 = vadd.f32 %v95, %v96
    %v98 = vrot.slane %v97, 1
    %v99 = vadd.f32 %v97, %v98
    %v100 = vrot.slane %v93, 4
    %v101 = vadd.f32 %v93, %v100
    %v102 = vrot.slane %v101, 2
    %v103 = vadd.f32 %v101, %v102
    %v104 = vrot.slane %v103, 1
    %v105 = vadd.f32 %v103, %v104
    %v108 = vsel %vm86, %v105, %v99
    %v110 = vadd.f32 %v91, %v108
    %111 = vst [vmem:[#allocation8] sm:$0x3] %v110
    // Predicated region
    $region22: #{tpu_custom_call.1} parent=1 // pred_check
      _
    $region23: #{tpu_custom_call.1} parent=1 // pred_check_branch
      %113 = sbr.rel (0) target = $region25
    $region24: #{tpu_custom_call.1} parent=1 // pred_region
      %s115 = ssub.s32 32, 32
      %116 = vsyncadd [#allocation4], %s115
      %s118 = sshll.u32 [#allocation7], 4
      %s119 = int_to_ptr.vmem [resolvable:$true] %s118
      %121 = dma.vmem_to_hbm [thread:$0]  %s119, 32, %s2, [#allocation4]
    $region25: #{tpu_custom_call.1} parent=1 // pred_fallthru
      _
    // Predicated region
    $region26: #{tpu_custom_call.1} parent=1 // pred_check
      _
    $region27: #{tpu_custom_call.1} parent=1 // pred_check_branch
      %123 = sbr.rel (0) target = $region29
    $region28: #{tpu_custom_call.1} parent=1 // pred_region
      %s125 = ssub.s32 32, 32
      %126 = vsyncadd [#allocation9], %s125
      %s128 = sshll.u32 [#allocation8], 4
      %s129 = int_to_ptr.vmem [resolvable:$true] %s128
      %131 = dma.vmem_to_hbm [thread:$0]  %s129, 32, %s3, [#allocation9]
    $region29: #{tpu_custom_call.1} parent=1 // pred_fallthru
      _
    // Predicated region
    $region30: #{tpu_custom_call.1} parent=1 // pred_check
      _
    $region31: #{tpu_custom_call.1} parent=1 // pred_check_branch
      %133 = sbr.rel (0) target = $region33
    $region32: #{tpu_custom_call.1} parent=1 // pred_region
      %134 = dma.done [#allocation4], 32
    $region33: #{tpu_custom_call.1} parent=1 // pred_fallthru
      _
    // Predicated region
    $region34: #{tpu_custom_call.1} parent=1 // pred_check
      _
    $region35: #{tpu_custom_call.1} parent=1 // pred_check_branch
      %136 = sbr.rel (0) target = $region37
    $region36: #{tpu_custom_call.1} parent=1 // pred_region
      %137 = dma.done [#allocation9], 32
    $region37: #{tpu_custom_call.1} parent=1 // pred_fallthru
      _
    %138 = vsyncpa [#allocation3], 1
    %139 = vsyncpa [#allocation6], 1
    %140 = vsyncpa [#allocation4], 1
    %141 = vsyncpa [#allocation9], 1

</llo_original>
